<compile_context>
chip_gen: v7x
topology: tpu7x:2x2x1
jax: 0.10.0
libtpu: 0.0.40
codegen_flags: <defaults>
</compile_context>

<pallas_src>
import functools

import jax
import jax.numpy as jnp
from jax.experimental import pallas as pl
from jax.experimental.pallas import tpu as pltpu


def _normalize_kernel(x_ref, o_ref, *, p: float, eps: float):
    # block: (TB, C, TILE_HW); reduction over axis=1 (C)
    x = x_ref[...]
    xf = x if x.dtype == jnp.float32 else x.astype(jnp.float32)

    if p == 2.0:
        sum_sq = jnp.sum(xf * xf, axis=1, keepdims=True)           # (TB, 1, TILE_HW)
        # clamp on the *norm*: norm > eps  <=>  sum_sq > eps^2
        inv = jnp.where(sum_sq > eps * eps, jax.lax.rsqrt(sum_sq), 1.0 / eps)
    elif p == 1.0:
        s = jnp.sum(jnp.abs(xf), axis=1, keepdims=True)
        inv = jnp.where(s > eps, 1.0 / s, 1.0 / eps)
    else:
        norm = jnp.sum(jnp.abs(xf) ** p, axis=1, keepdims=True) ** (1.0 / p)
        inv = jnp.where(norm > eps, 1.0 / norm, 1.0 / eps)

    o_ref[...] = (xf * inv).astype(o_ref.dtype)                    # broadcast VPU multiply


def _round_up(x: int, m: int) -> int:
    return ((x + m - 1) // m) * m


def normalize(x, p: float = 2.0, dim: int = 1, eps: float = 1e-12,
              *, block_bytes_budget: int = 2 * 1024 * 1024):
    """JAX/Pallas equivalent of torch.nn.functional.normalize for 4D NCHW x, dim=1."""
    assert x.ndim == 4 and dim == 1, "this kernel implements dim=1 over NCHW"
    B, C, H, W = x.shape
    HW = H * W
    itemsize = jnp.dtype(x.dtype).itemsize

    # --- lane tile: multiple of 128, capped by the per-block byte budget ---
    max_lanes_by_budget = max(128, ((block_bytes_budget // (C * itemsize)) // 128) * 128)
    tile_hw = min(_round_up(HW, 128), 2048, max_lanes_by_budget)
    hw_pad = _round_up(HW, tile_hw)

    # --- batch tile: pack several batch elements per step for tiny blocks ---
    per_b_bytes = C * tile_hw * itemsize
    tb = 1
    for cand in range(B, 0, -1):
        if B % cand == 0 and cand * per_b_bytes <= block_bytes_budget:
            tb = cand
            break

    xr = x.reshape(B, C, HW)
    if hw_pad != HW:
        xr = jnp.pad(xr, ((0, 0), (0, 0), (0, hw_pad - HW)))

    grid = (B // tb, hw_pad // tile_hw)

    cost = pl.CostEstimate(
        flops=3 * B * C * hw_pad,
        transcendentals=B * hw_pad,
        bytes_accessed=2 * B * C * hw_pad * itemsize,
    )

    out = pl.pallas_call(
        functools.partial(_normalize_kernel, p=p, eps=eps),
        out_shape=jax.ShapeDtypeStruct((B, C, hw_pad), x.dtype),
        grid=grid,
        in_specs=[pl.BlockSpec((tb, C, tile_hw), lambda b, s: (b, 0, s))],
        out_specs=pl.BlockSpec((tb, C, tile_hw), lambda b, s: (b, 0, s)),
        compiler_params=pltpu.CompilerParams(
            dimension_semantics=("parallel", "parallel")),
        cost_estimate=cost,
    )(xr)

    if hw_pad != HW:
        out = out[:, :, :HW]
    return out.reshape(B, C, H, W)


if __name__ == "__main__":
    key = jax.random.PRNGKey(0)
    x = jax.random.normal(key, (2, 4, 16, 16), dtype=jnp.float32)

    y = normalize(x, p=2.0, dim=1, eps=1e-12)
    jax.block_until_ready(y)

    # reference check (plain JAX, mirrors F.normalize: x / clamp_min(||x||_2, eps))
    norm = jnp.sqrt(jnp.sum(x * x, axis=1, keepdims=True))
    y_ref = x / jnp.maximum(norm, 1e-12)
    assert y.shape == x.shape
    assert jnp.allclose(y, y_ref, atol=1e-6, rtol=1e-5), float(jnp.max(jnp.abs(y - y_ref)))

    print("KERNEL_OK")
</pallas_src>

<mosaic_0001>
module attributes {stable_mosaic.version = 11 : i64} {
  func.func @_normalize_kernel(%arg0: i32, %arg1: i32, %arg2: memref<2x4x256xf32, #tpu.memory_space<vmem>>, %arg3: memref<2x4x256xf32, #tpu.memory_space<vmem>>) attributes {dimension_semantics = [#tpu.dimension_semantics<parallel>, #tpu.dimension_semantics<parallel>], iteration_bounds = array<i64: 1, 1>, scalar_prefetch = 0 : i64, scratch_operands = 0 : i64, tpu.core_type = #tpu.core_type<tc>, window_params = [{transform_indices = @transform_0, window_bounds = array<i64: 2, 4, 256>}, {transform_indices = @transform_1, window_bounds = array<i64: 2, 4, 256>}]} {
    %c0 = arith.constant 0 : index
    %c0_0 = arith.constant 0 : index
    %c0_1 = arith.constant 0 : index
    %0 = vector.load %arg2[%c0, %c0_0, %c0_1] : memref<2x4x256xf32, #tpu.memory_space<vmem>>, vector<2x4x256xf32>
    %1 = arith.mulf %0, %0 : vector<2x4x256xf32>
    %cst = arith.constant dense<0.000000e+00> : vector<2x256xf32>
    %2 = vector.multi_reduction <add>, %1, %cst [1] : vector<2x4x256xf32> to vector<2x256xf32>
    %3 = vector.shape_cast %2 : vector<2x256xf32> to vector<2x1x256xf32>
    %cst_2 = arith.constant 1.000000e-24 : f32
    %4 = vector.broadcast %cst_2 : f32 to vector<2x1x256xf32>
    %5 = arith.cmpf ogt, %3, %4 : vector<2x1x256xf32>
    %6 = math.rsqrt %3 : vector<2x1x256xf32>
    %cst_3 = arith.constant 9.99999995E+11 : f32
    %7 = vector.broadcast %cst_3 : f32 to vector<2x1x256xf32>
    %8 = arith.select %5, %6, %7 : vector<2x1x256xi1>, vector<2x1x256xf32>
    %9 = vector.broadcast %8 : vector<2x1x256xf32> to vector<2x4x256xf32>
    %10 = arith.mulf %0, %9 : vector<2x4x256xf32>
    %c0_4 = arith.constant 0 : index
    %c0_5 = arith.constant 0 : index
    %c0_6 = arith.constant 0 : index
    %11 = vector.load %arg3[%c0_4, %c0_5, %c0_6] : memref<2x4x256xf32, #tpu.memory_space<vmem>>, vector<2x4x256xf32>
    tpu.vector_store %arg3[%c0_4, %c0_5, %c0_6], %10 {strides = array<i32>} : memref<2x4x256xf32, #tpu.memory_space<vmem>>, vector<2x4x256xf32>,
    return
  }
  func.func @transform_0(%arg0: i32, %arg1: i32) -> (i32, i32, i32) {
    %c0_i32 = arith.constant 0 : i32
    %c0_i32_0 = arith.constant 0 : i32
    return %arg0, %c0_i32, %arg1 : i32, i32, i32
  }
  func.func @transform_1(%arg0: i32, %arg1: i32) -> (i32, i32, i32) {
    %c0_i32 = arith.constant 0 : i32
    %c0_i32_0 = arith.constant 0 : i32
    return %arg0, %c0_i32, %arg1 : i32, i32, i32
  }
}

</mosaic_0001>

<llo_original>
// kernel: tpu_custom_call.1
$region0: #{tpu_custom_call.1}
  #allocation0 [shape = 'u32[]', space=smem, size = 0x4, offset = 0x4, fixed_abs, tag = 'smem constant byte address 0x4 - core index']
  #allocation1 [shape = 'u32[144,128]{1,0:T(1,128)}', space=vmem, size = 0x12000, scoped, tag = 'internal scratch']
  %s0 = inlined_call_operand.hbm [shape: f32[2,4,256], index: 0, kind: input, shape index: {}]
  %s1 = inlined_call_operand.hbm [shape: f32[2,4,256], index: 1, kind: output, shape index: {}]
  %s2 = sld [smem:[#allocation0]]
  $region18: #{tpu_custom_call.1} parent=0
    _
  %s4 = ssub.s32 1, %s2
  %s5 = scalar_select 0, %s4, %s2
  $region1: #{tpu_custom_call.1} parent=0
    #allocation2 [shape = 'u8[8192]{0}', space=vmem, size = 0x2000, scoped, tag = 'input window, operand 0, single buffered']
    #allocation3 [shape = 's32[1]{0}', space=sflag, size = 0x4, scoped, tag = 'scoped memory for tpu_custom_call.1']
    #allocation4 [shape = 's32[1]{0}', space=sflag, size = 0x4, scoped, tag = 'scoped memory for tpu_custom_call.1']
    #allocation5 [shape = 'u8[8192]{0}', space=vmem, size = 0x2000, scoped, tag = 'output window, operand 0, single buffered']
    %6 = vsyncpa [#allocation3], 0
    %7 = vsyncpa [#allocation4], 0
    // Predicated region
    $region2: #{tpu_custom_call.1} parent=1 // pred_check
      _
    $region3: #{tpu_custom_call.1} parent=1 // pred_check_branch
      %9 = sbr.rel (0) target = $region5
    $region4: #{tpu_custom_call.1} parent=1 // pred_region
      %s11 = ssub.s32 256, 256
      %12 = vsyncadd [#allocation3], %s11
      %s13 = sshll.u32 [#allocation2], 4
      %s14 = int_to_ptr.vmem [resolvable:$true] %s13
      %19 = dma.hbm_to_vmem [thread:$0]  %s0, 256, %s14, [#allocation3], 128, 128, 8
    $region5: #{tpu_custom_call.1} parent=1 // pred_fallthru
      _
    // Predicated region
    $region6: #{tpu_custom_call.1} parent=1 // pred_check
      _
    $region7: #{tpu_custom_call.1} parent=1 // pred_check_branch
      %21 = sbr.rel (0) target = $region9
    $region8: #{tpu_custom_call.1} parent=1 // pred_region
      %22 = dma.done [#allocation3], 256
    $region9: #{tpu_custom_call.1} parent=1 // pred_fallthru
      _
    %v23 = vld [vmem:[#allocation2] sm:$0xff]
    %v24 = vld [vmem:[#allocation2 + $0x8] sm:$0xff]
    %v25 = vmul.f32 %v23, %v23
    %v26 = vmul.f32 %v24, %v24
    %v29 = vcombine.high %v25, %v25
    %v30 = vcombine.high %v26, %v26
    %vm33 = vcmask 1043456
    %v34 = vsel %vm33, %v25, 0.0
    %v35 = vrot.slane %v34, 4
    %v36 = vadd.f32 %v34, %v35
    %v37 = vrot.slane %v36, 2
    %v38 = vadd.f32 %v36, %v37
    %v39 = vrot.slane %v38, 1
    %v40 = vadd.f32 %v38, %v39
    %v41 = vsel %vm33, %v29, 0.0
    %v42 = vrot.slane %v41, 4
    %v43 = vadd.f32 %v41, %v42
    %v44 = vrot.slane %v43, 2
    %v45 = vadd.f32 %v43, %v44
    %v46 = vrot.slane %v45, 1
    %v47 = vadd.f32 %v45, %v46
    %v48 = vsel %vm33, %v26, 0.0
    %v49 = vrot.slane %v48, 4
    %v50 = vadd.f32 %v48, %v49
    %v51 = vrot.slane %v50, 2
    %v52 = vadd.f32 %v50, %v51
    %v53 = vrot.slane %v52, 1
    %v54 = vadd.f32 %v52, %v53
    %v55 = vsel %vm33, %v30, 0.0
    %v56 = vrot.slane %v55, 4
    %v57 = vadd.f32 %v55, %v56
    %v58 = vrot.slane %v57, 2
    %v59 = vadd.f32 %v57, %v58
    %v60 = vrot.slane %v59, 1
    %v61 = vadd.f32 %v59, %v60
    %vm62 = vcmp.gt.f32.partialorder %v40, 1e-24
    %vm63 = vcmp.gt.f32.partialorder %v47, 1e-24
    %vm64 = vcmp.gt.f32.partialorder %v54, 1e-24
    %vm65 = vcmp.gt.f32.partialorder %v61, 1e-24
    %v66 = vrsqrt.pop %v40
    %v67 = vrsqrt.pop %v47
    %v68 = vrsqrt.pop %v54
    %v69 = vrsqrt.pop %v61
    %v70 = vsel %vm62, %v66, 1e+12
    %v71 = vsel %vm63, %v67, 1e+12
    %v72 = vsel %vm64, %v68, 1e+12
    %v73 = vsel %vm65, %v69, 1e+12
    %v78 = vcombine.low %v70, %v71
    %v79 = vcombine.low %v72, %v73
    %v82 = vmul.f32 %v23, %v78
    %v83 = vmul.f32 %v24, %v79
    %84 = vst [vmem:[#allocation5] sm:$0xff] %v82
    %85 = vst [vmem:[#allocation5 + $0x8] sm:$0xff] %v83
    // Predicated region
    $region10: #{tpu_custom_call.1} parent=1 // pred_check
      _
    $region11: #{tpu_custom_call.1} parent=1 // pred_check_branch
      %87 = sbr.rel (0) target = $region13
    $region12: #{tpu_custom_call.1} parent=1 // pred_region
      %s89 = ssub.s32 256, 256
      %90 = vsyncadd [#allocation4], %s89
      %s91 = sshll.u32 [#allocation5], 4
      %s92 = int_to_ptr.vmem [resolvable:$true] %s91
      %97 = dma.vmem_to_hbm [thread:$0]  %s92, 256, %s1, [#allocation4], 128, 128, 8
    $region13: #{tpu_custom_call.1} parent=1 // pred_fallthru
      _
    // Predicated region
    $region14: #{tpu_custom_call.1} parent=1 // pred_check
      _
    $region15: #{tpu_custom_call.1} parent=1 // pred_check_branch
      %99 = sbr.rel (0) target = $region17
    $region16: #{tpu_custom_call.1} parent=1 // pred_region
      %100 = dma.done [#allocation4], 256
    $region17: #{tpu_custom_call.1} parent=1 // pred_fallthru
      _
    %101 = vsyncpa [#allocation3], 1
    %102 = vsyncpa [#allocation4], 1

</llo_original>
